<compile_context>
chip_gen: v6e
topology: v6e:2x2x1
jax: 0.10.0
libtpu: 0.0.40
codegen_flags: <defaults>
</compile_context>

<pallas_src>
import functools

import jax
import jax.numpy as jnp
from jax.experimental import pallas as pl
from jax.experimental.pallas import tpu as pltpu

LANE = 128
MAX_BLOCK_ROWS = 4096          # (4096,128) f32 = 2 MiB/input/step; 3 in x 2 bufs = 12 MiB
CHUNK_ROWS = 512               # in-kernel sub-chunk; bounds elementwise temps to ~256 KiB
VMEM_LIMIT_BYTES = 48 * 1024 * 1024


def _num_tensorcores():
    """Best-effort TensorCores-per-device (2 on v7x / megacore-class, else 1)."""
    try:
        kind = jax.devices()[0].device_kind.lower().replace(" ", "")
    except Exception:
        return 1
    if "v7" in kind or "v4" in kind or "v5p" in kind:
        return 2
    return 1


def _masked_smooth_l1_kernel(x_ref, t_ref, m_ref, out_ref, *,
                             block_rows, valid_rows, last_block, full_last):
    j = pl.program_id(0)           # shard (parallel axis)
    k = pl.program_id(1)           # reduction step within shard (arbitrary)
    inner = pl.num_programs(1)
    step = j * inner + k

    # out_ref is this shard's (8,128) accumulator (same output block for all k).
    @pl.when(k == 0)
    def _():
        out_ref[...] = jnp.zeros_like(out_ref)

    # Sub-chunking keeps elementwise temporaries bounded instead of
    # materializing full (block_rows,128) intermediates in VMEM.
    if (block_rows % 8 == 0 and block_rows % CHUNK_ROWS == 0
            and block_rows > CHUNK_ROWS):
        sub, n_chunks = CHUNK_ROWS, block_rows // CHUNK_ROWS
    else:
        sub, n_chunks = block_rows, 1

    def smooth_l1(x, t, m):
        # Faithful to the module: only `target` is masked; beta = 1.0.
        d = x.astype(jnp.float32) - t.astype(jnp.float32) * m.astype(jnp.float32)
        ad = jnp.abs(d)
        return jnp.where(ad < 1.0, 0.5 * d * d, ad - 0.5)

    def accumulate(masked):
        def chunk(c, carry):
            if n_chunks == 1:
                r0 = 0
            else:
                r0 = pl.multiple_of(c * sub, sub)
            x = x_ref[pl.ds(r0, sub), :]
            t = t_ref[pl.ds(r0, sub), :]
            m = m_ref[pl.ds(r0, sub), :]
            per = smooth_l1(x, t, m)
            if masked:
                # Only the ragged last tile pays iota+compare+select; rows past
                # the true extent may hold garbage from the partial DMA.
                row_ids = (step * block_rows + r0 +
                           jax.lax.broadcasted_iota(jnp.int32, (sub, LANE), 0))
                per = jnp.where(row_ids < valid_rows, per, 0.0)
            if sub % 8 == 0:
                # Pure VALU partial reduce into the fixed (8,128) accumulator.
                out_ref[...] += per.reshape(sub // 8, 8, LANE).sum(axis=0)
            else:
                # Tiny arrays only (rows not 8-aligned); perf irrelevant here.
                out_ref[0:1, :] += per.sum(axis=0, keepdims=True)
            return carry

        if n_chunks == 1:
            chunk(0, 0)
        else:
            jax.lax.fori_loop(0, n_chunks, chunk, 0)

    # Hot path: full tiles -> no row mask at all.
    hot = (step <= last_block) if full_last else (step < last_block)

    @pl.when(hot)
    def _():
        accumulate(masked=False)

    if not full_last:
        @pl.when(step == last_block)
        def _():
            accumulate(masked=True)

    # step > last_block: clamped duplicate tile on the sharded grid -> no-op.


def masked_smooth_l1(inp, target, mask, *, num_shards=None):
    assert inp.shape == target.shape == mask.shape
    total = int(inp.size)          # true element count for the mean

    def as_rows(a):
        a = a.reshape(-1)          # free for contiguous arrays
        pad = (-a.shape[0]) % LANE
        if pad:
            # TODO(synk): rare path (size % 128 != 0) copies once; zero padding
            # contributes exactly 0 to the sum (d = 0 -> per = 0).
            a = jnp.pad(a, (0, pad))
        return a.reshape(-1, LANE)

    xr, tr, mr = as_rows(inp), as_rows(target), as_rows(mask)
    rows = xr.shape[0]

    block_rows = rows if rows <= MAX_BLOCK_ROWS else MAX_BLOCK_ROWS
    total_steps = int(pl.cdiv(rows, block_rows))
    full_last = (rows % block_rows) == 0
    last_block = total_steps - 1

    if num_shards is None:
        num_shards = _num_tensorcores()
    num_shards = max(1, min(int(num_shards), total_steps))
    inner = int(pl.cdiv(total_steps, num_shards))

    def in_map(j, k):
        # Clamp so over-provisioned (shard, step) pairs map to a valid block
        # (no fully-OOB DMA); the kernel does no compute for them.
        return (jnp.minimum(j * inner + k, last_block), 0)

    tile_spec = pl.BlockSpec((block_rows, LANE), in_map)

    partials = pl.pallas_call(
        functools.partial(_masked_smooth_l1_kernel,
                          block_rows=block_rows, valid_rows=rows,
                          last_block=last_block, full_last=full_last),
        out_shape=jax.ShapeDtypeStruct((num_shards, 8, LANE), jnp.float32),
        grid_spec=pltpu.PrefetchScalarGridSpec(
            num_scalar_prefetch=0,
            grid=(num_shards, inner),
            in_specs=[tile_spec, tile_spec, tile_spec],
            out_specs=pl.BlockSpec((None, 8, LANE), lambda j, k: (j, 0, 0)),
        ),
        # TODO(synk): on v7x, verify with xprof that the "parallel" shard axis
        # lands on both TensorCores; if not, switch it to pltpu.CORE_PARALLEL.
        compiler_params=pltpu.CompilerParams(
            dimension_semantics=("parallel", "arbitrary"),
            vmem_limit_bytes=VMEM_LIMIT_BYTES),
    )(xr, tr, mr)

    return jnp.sum(partials) / jnp.float32(total)


def _reference(inp, target, mask):
    d = (inp.astype(jnp.float32)
         - target.astype(jnp.float32) * mask.astype(jnp.float32))
    ad = jnp.abs(d)
    per = jnp.where(ad < 1.0, 0.5 * d * d, ad - 0.5)
    return jnp.mean(per)


if __name__ == "__main__":
    root = jax.random.PRNGKey(0)

    def run_case(case_key, shape, rtol=1e-4, atol=1e-5, **kw):
        k1, k2, k3 = jax.random.split(case_key, 3)
        x = jax.random.normal(k1, shape, dtype=jnp.float32) * 2.0
        t = jax.random.normal(k2, shape, dtype=jnp.float32) * 2.0
        m = (jax.random.uniform(k3, shape) > 0.5).astype(jnp.float32)
        out = masked_smooth_l1(x, t, m, **kw)
        jax.block_until_ready(out)
        ref = _reference(x, t, m)
        assert jnp.allclose(out, ref, rtol=rtol, atol=atol), (shape, out, ref)

    # Primary small NCHW case (matches the module's intended usage).
    run_case(jax.random.fold_in(root, 0), (2, 4, 16, 16))
    # Multi-tile path: 9216 rows -> 3 blocks of 4096, ragged masked tail;
    # num_shards=2 forced so the clamped duplicate no-op step is exercised
    # regardless of which TPU generation runs the test.
    run_case(jax.random.fold_in(root, 1), (2, 4, 384, 384), num_shards=2)
    # Same shape on the auto (chip-aware) shard count.
    run_case(jax.random.fold_in(root, 2), (2, 4, 384, 384))
    # Odd shape: exercises lane padding and the non-multiple-of-8 single block.
    run_case(jax.random.fold_in(root, 3), (2, 3, 7, 9))

    print("KERNEL_OK")
</pallas_src>

<mosaic_0001>
module attributes {stable_mosaic.version = 11 : i64} {
  func.func @_masked_smooth_l1_kernel(%arg0: i32, %arg1: i32, %arg2: memref<16x128xf32, #tpu.memory_space<vmem>>, %arg3: memref<16x128xf32, #tpu.memory_space<vmem>>, %arg4: memref<16x128xf32, #tpu.memory_space<vmem>>, %arg5: memref<1x8x128xf32, #tpu.memory_space<vmem>>) attributes {dimension_semantics = [#tpu.dimension_semantics<parallel>, #tpu.dimension_semantics<arbitrary>], iteration_bounds = array<i64: 1, 1>, scalar_prefetch = 0 : i64, scratch_operands = 0 : i64, tpu.core_type = #tpu.core_type<tc>, window_params = [{transform_indices = @transform_0, window_bounds = array<i64: 16, 128>}, {transform_indices = @transform_1, window_bounds = array<i64: 16, 128>}, {transform_indices = @transform_2, window_bounds = array<i64: 16, 128>}, {transform_indices = @transform_3, window_bounds = array<i64: 1, 8, 128>}]} {
    %c1_i32 = arith.constant 1 : i32
    %0 = arith.muli %arg0, %c1_i32 : i32
    %1 = arith.addi %0, %arg1 : i32
    %c0_i32 = arith.constant 0 : i32
    %2 = arith.cmpi eq, %arg1, %c0_i32 : i32
    %3 = arith.extui %2 : i1 to i32
    %c0_i32_0 = arith.constant 0 : i32
    %4 = arith.cmpi ne, %3, %c0_i32_0 : i32
    scf.if %4 {
      %cst = arith.constant 0.000000e+00 : f32
      %8 = vector.broadcast %cst : f32 to vector<8x128xf32>
      %c0 = arith.constant 0 : index
      %c0_3 = arith.constant 0 : index
      %c0_4 = arith.constant 0 : index
      %9 = vector.load %arg5[%c0, %c0_3, %c0_4] : memref<1x8x128xf32, #tpu.memory_space<vmem>>, vector<1x8x128xf32>
      %10 = vector.shape_cast %9 : vector<1x8x128xf32> to vector<8x128xf32>
      %11 = vector.shape_cast %8 : vector<8x128xf32> to vector<1x8x128xf32>
      tpu.vector_store %arg5[%c0, %c0_3, %c0_4], %11 {strides = array<i32>} : memref<1x8x128xf32, #tpu.memory_space<vmem>>, vector<1x8x128xf32>,
    } else {
    }
    %c0_i32_1 = arith.constant 0 : i32
    %5 = arith.cmpi sle, %1, %c0_i32_1 : i32
    %6 = arith.extui %5 : i1 to i32
    %c0_i32_2 = arith.constant 0 : i32
    %7 = arith.cmpi ne, %6, %c0_i32_2 : i32
    scf.if %7 {
      %c0 = arith.constant 0 : index
      %c0_3 = arith.constant 0 : index
      %8 = vector.load %arg2[%c0, %c0_3] : memref<16x128xf32, #tpu.memory_space<vmem>>, vector<16x128xf32>
      %c0_4 = arith.constant 0 : index
      %c0_5 = arith.constant 0 : index
      %9 = vector.load %arg3[%c0_4, %c0_5] : memref<16x128xf32, #tpu.memory_space<vmem>>, vector<16x128xf32>
      %c0_6 = arith.constant 0 : index
      %c0_7 = arith.constant 0 : index
      %10 = vector.load %arg4[%c0_6, %c0_7] : memref<16x128xf32, #tpu.memory_space<vmem>>, vector<16x128xf32>
      %11 = arith.mulf %9, %10 : vector<16x128xf32>
      %12 = arith.subf %8, %11 : vector<16x128xf32>
      %13 = math.absf %12 : vector<16x128xf32>
      %cst = arith.constant 1.000000e+00 : f32
      %14 = vector.broadcast %cst : f32 to vector<16x128xf32>
      %15 = arith.cmpf olt, %13, %14 : vector<16x128xf32>
      %cst_8 = arith.constant 5.000000e-01 : f32
      %16 = vector.broadcast %cst_8 : f32 to vector<16x128xf32>
      %17 = arith.mulf %16, %12 : vector<16x128xf32>
      %18 = arith.mulf %17, %12 : vector<16x128xf32>
      %cst_9 = arith.constant 5.000000e-01 : f32
      %19 = vector.broadcast %cst_9 : f32 to vector<16x128xf32>
      %20 = arith.subf %13, %19 : vector<16x128xf32>
      %21 = arith.select %15, %18, %20 : vector<16x128xi1>, vector<16x128xf32>
      %c0_10 = arith.constant 0 : index
      %c0_11 = arith.constant 0 : index
      %c0_12 = arith.constant 0 : index
      %22 = vector.load %arg5[%c0_10, %c0_11, %c0_12] : memref<1x8x128xf32, #tpu.memory_space<vmem>>, vector<1x8x128xf32>
      %23 = vector.shape_cast %22 : vector<1x8x128xf32> to vector<8x128xf32>
      %24 = vector.shape_cast %21 : vector<16x128xf32> to vector<2x8x128xf32>
      %cst_13 = arith.constant dense<0.000000e+00> : vector<8x128xf32>
      %25 = vector.multi_reduction <add>, %24, %cst_13 [0] : vector<2x8x128xf32> to vector<8x128xf32>
      %26 = arith.addf %23, %25 : vector<8x128xf32>
      %c0_14 = arith.constant 0 : index
      %c0_15 = arith.constant 0 : index
      %c0_16 = arith.constant 0 : index
      %27 = vector.load %arg5[%c0_14, %c0_15, %c0_16] : memref<1x8x128xf32, #tpu.memory_space<vmem>>, vector<1x8x128xf32>
      %28 = vector.shape_cast %27 : vector<1x8x128xf32> to vector<8x128xf32>
      %29 = vector.shape_cast %26 : vector<8x128xf32> to vector<1x8x128xf32>
      tpu.vector_store %arg5[%c0_14, %c0_15, %c0_16], %29 {strides = array<i32>} : memref<1x8x128xf32, #tpu.memory_space<vmem>>, vector<1x8x128xf32>,
    } else {
    }
    return
  }
  func.func @transform_0(%arg0: i32, %arg1: i32) -> (i32, i32) {
    %c1_i32 = arith.constant 1 : i32
    %0 = arith.muli %arg0, %c1_i32 : i32
    %1 = arith.addi %0, %arg1 : i32
    %c0_i32 = arith.constant 0 : i32
    %2 = arith.minsi %1, %c0_i32 : i32
    %c0_i32_0 = arith.constant 0 : i32
    %c0_i32_1 = arith.constant 0 : i32
    return %2, %c0_i32_0 : i32, i32
  }
  func.func @transform_1(%arg0: i32, %arg1: i32) -> (i32, i32) {
    %c1_i32 = arith.constant 1 : i32
    %0 = arith.muli %arg0, %c1_i32 : i32
    %1 = arith.addi %0, %arg1 : i32
    %c0_i32 = arith.constant 0 : i32
    %2 = arith.minsi %1, %c0_i32 : i32
    %c0_i32_0 = arith.constant 0 : i32
    %c0_i32_1 = arith.constant 0 : i32
    return %2, %c0_i32_0 : i32, i32
  }
  func.func @transform_2(%arg0: i32, %arg1: i32) -> (i32, i32) {
    %c1_i32 = arith.constant 1 : i32
    %0 = arith.muli %arg0, %c1_i32 : i32
    %1 = arith.addi %0, %arg1 : i32
    %c0_i32 = arith.constant 0 : i32
    %2 = arith.minsi %1, %c0_i32 : i32
    %c0_i32_0 = arith.constant 0 : i32
    %c0_i32_1 = arith.constant 0 : i32
    return %2, %c0_i32_0 : i32, i32
  }
  func.func @transform_3(%arg0: i32, %arg1: i32) -> (i32, i32, i32) {
    %c0_i32 = arith.constant 0 : i32
    %c0_i32_0 = arith.constant 0 : i32
    %c0_i32_1 = arith.constant 0 : i32
    return %arg0, %c0_i32, %c0_i32_0 : i32, i32, i32
  }
}

</mosaic_0001>

<llo_original>
// kernel: tpu_custom_call.1
$region0: #{tpu_custom_call.1}
  #allocation0 [shape = 'u32[]', space=smem, size = 0x4, offset = 0x4, fixed_abs, tag = 'smem constant byte address 0x4 - core index']
  #allocation1 [shape = 'u32[144,128]{1,0:T(1,128)}', space=vmem, size = 0x12000, scoped, tag = 'internal scratch']
  %s0 = inlined_call_operand.hbm [shape: f32[16,128], index: 0, kind: input, shape index: {}]
  %s1 = inlined_call_operand.hbm [shape: f32[16,128], index: 1, kind: input, shape index: {}]
  %s2 = inlined_call_operand.hbm [shape: f32[16,128], index: 2, kind: input, shape index: {}]
  %s3 = inlined_call_operand.hbm [shape: f32[1,8,128], index: 3, kind: output, shape index: {}]
  %s4 = sld [smem:[#allocation0]]
  $region42: #{tpu_custom_call.1} parent=0
    _
  %s6 = ssub.s32 1, %s4
  %s7 = scalar_select 0, %s6, %s4
  $region1: #{tpu_custom_call.1} parent=0
    #allocation2 [shape = 'u8[8192]{0}', space=vmem, size = 0x2000, scoped, tag = 'input window, operand 0, single buffered']
    #allocation3 [shape = 's32[1]{0}', space=sflag, size = 0x4, scoped, tag = 'scoped memory for tpu_custom_call.1']
    #allocation4 [shape = 's32[1]{0}', space=sflag, size = 0x4, scoped, tag = 'scoped memory for tpu_custom_call.1']
    #allocation5 [shape = 'u8[8192]{0}', space=vmem, size = 0x2000, scoped, tag = 'input window, operand 1, single buffered']
    #allocation6 [shape = 's32[1]{0}', space=sflag, size = 0x4, scoped, tag = 'scoped memory for tpu_custom_call.1']
    #allocation7 [shape = 'u8[8192]{0}', space=vmem, size = 0x2000, scoped, tag = 'input window, operand 2, single buffered']
    #allocation8 [shape = 'u8[4096]{0}', space=vmem, size = 0x1000, scoped, tag = 'output window, operand 0, single buffered']
    %8 = vsyncpa [#allocation3], 0
    %9 = vsyncpa [#allocation6], 0
    %10 = vsyncpa [#allocation4], 0
    // Predicated region
    $region2: #{tpu_custom_call.1} parent=1 // pred_check
      _
    $region3: #{tpu_custom_call.1} parent=1 // pred_check_branch
      %12 = sbr.rel (0) target = $region5
    $region4: #{tpu_custom_call.1} parent=1 // pred_region
      %s13 = sadd.s32 0, 0
      %p14 = scmp.lt.s32.totalorder %s13, 0
      %s15 = scalar_select %p14, %s13, 0
      %s16 = smul.u32 2, %s15
      %s18 = ssub.s32 256, 256
      %19 = vsyncadd [#allocation3], %s18
      %s20 = smul.addr %s16, 128
      %s21 = scalar_lea.hbm %s0, %s20
      %s22 = sshll.u32 [#allocation2], 4
      %s23 = int_to_ptr.vmem [resolvable:$true] %s22
      %28 = dma.hbm_to_vmem [thread:$0]  %s21, 256, %s23, [#allocation3], 128, 128, 8
    $region5: #{tpu_custom_call.1} parent=1 // pred_fallthru
      _
    // Predicated region
    $region6: #{tpu_custom_call.1} parent=1 // pred_check
      _
    $region7: #{tpu_custom_call.1} parent=1 // pred_check_branch
      %30 = sbr.rel (0) target = $region9
    $region8: #{tpu_custom_call.1} parent=1 // pred_region
      %s31 = sadd.s32 0, 0
      %p32 = scmp.lt.s32.totalorder %s31, 0
      %s33 = scalar_select %p32, %s31, 0
      %s34 = smul.u32 2, %s33
      %s36 = ssub.s32 256, 256
      %37 = vsyncadd [#allocation6], %s36
      %s38 = smul.addr %s34, 128
      %s39 = scalar_lea.hbm %s1, %s38
      %s40 = sshll.u32 [#allocation5], 4
      %s41 = int_to_ptr.vmem [resolvable:$true] %s40
      %46 = dma.hbm_to_vmem [thread:$0]  %s39, 256, %s41, [#allocation6], 128, 128, 8
    $region9: #{tpu_custom_call.1} parent=1 // pred_fallthru
      _
    // Predicated region
    $region10: #{tpu_custom_call.1} parent=1 // pred_check
      _
    $region11: #{tpu_custom_call.1} parent=1 // pred_check_branch
      %48 = sbr.rel (0) target = $region13
    $region12: #{tpu_custom_call.1} parent=1 // pred_region
      %s49 = sadd.s32 0, 0
      %p50 = scmp.lt.s32.totalorder %s49, 0
      %s51 = scalar_select %p50, %s49, 0
      %s52 = smul.u32 2, %s51
      %s54 = ssub.s32 256, 256
      %55 = vsyncadd [#allocation6], %s54
      %s56 = smul.addr %s52, 128
      %s57 = scalar_lea.hbm %s2, %s56
      %s58 = sshll.u32 [#allocation7], 4
      %s59 = int_to_ptr.vmem [resolvable:$true] %s58
      %64 = dma.hbm_to_vmem [thread:$0]  %s57, 256, %s59, [#allocation6], 128, 128, 8
    $region13: #{tpu_custom_call.1} parent=1 // pred_fallthru
      _
    // Predicated region
    $region14: #{tpu_custom_call.1} parent=1 // pred_check
      _
    $region15: #{tpu_custom_call.1} parent=1 // pred_check_branch
      %66 = sbr.rel (0) target = $region17
    $region16: #{tpu_custom_call.1} parent=1 // pred_region
      %67 = dma.done [#allocation3], 256
    $region17: #{tpu_custom_call.1} parent=1 // pred_fallthru
      _
    // Predicated region
    $region18: #{tpu_custom_call.1} parent=1 // pred_check
      _
    $region19: #{tpu_custom_call.1} parent=1 // pred_check_branch
      %69 = sbr.rel (0) target = $region21
    $region20: #{tpu_custom_call.1} parent=1 // pred_region
      %70 = dma.done [#allocation6], 256
    $region21: #{tpu_custom_call.1} parent=1 // pred_fallthru
      _
    // Predicated region
    $region22: #{tpu_custom_call.1} parent=1 // pred_check
      _
    $region23: #{tpu_custom_call.1} parent=1 // pred_check_branch
      %72 = sbr.rel (0) target = $region25
    $region24: #{tpu_custom_call.1} parent=1 // pred_region
      %73 = dma.done [#allocation6], 256
    $region25: #{tpu_custom_call.1} parent=1 // pred_fallthru
      _
    %s74 = sadd.s32 0, 0
    %p75 = scmp.lt.s32.totalorder %s74, 0
    %s76 = scalar_select %p75, %s74, 0
    %s77 = smul.u32 2, %s76
    %s78 = sadd.s32 0, 0
    %p79 = scmp.lt.s32.totalorder %s78, 0
    %s80 = scalar_select %p79, %s78, 0
    %s81 = smul.u32 2, %s80
    %s82 = sadd.s32 0, 0
    %p83 = scmp.lt.s32.totalorder %s82, 0
    %s84 = scalar_select %p83, %s82, 0
    %s85 = smul.u32 2, %s84
    %s86 = sadd.s32 0, 0
    %p87 = scmp.eq.s32.totalorder 0, 0
    // Predicated region
    $region26: #{tpu_custom_call.1} parent=1 // pred_check
      %p88 = pneg %p87
    $region27: #{tpu_custom_call.1} parent=1 // pred_check_branch
      %90 = sbr.rel (%p88) target = $region29
    $region28: #{tpu_custom_call.1} parent=1 // pred_region
      %91 = vst [vmem:[#allocation8] sm:$0xff] 0.0
    $region29: #{tpu_custom_call.1} parent=1 // pred_fallthru
      _
    %p92 = scmp.le.s32.totalorder %s86, 0
    // Predicated region
    $region30: #{tpu_custom_call.1} parent=1 // pred_check
      %p93 = pneg %p92
    $region31: #{tpu_custom_call.1} parent=1 // pred_check_branch
      %95 = sbr.rel (%p93) target = $region33
    $region32: #{tpu_custom_call.1} parent=1 // pred_region
      %v96 = vld [vmem:[#allocation2] sm:$0xff]
      %v97 = vld [vmem:[#allocation2 + $0x8] sm:$0xff]
      %v98 = vld [vmem:[#allocation5] sm:$0xff]
      %v99 = vld [vmem:[#allocation5 + $0x8] sm:$0xff]
      %v100 = vld [vmem:[#allocation7] sm:$0xff]
      %v101 = vld [vmem:[#allocation7 + $0x8] sm:$0xff]
      %v102 = vmul.f32 %v98, %v100
      %v103 = vmul.f32 %v99, %v101
      %v104 = vsub.f32 %v96, %v102
      %v105 = vsub.f32 %v97, %v103
      %v106 = vand.u32 2147483647, %v104
      %v107 = vand.u32 2147483647, %v105
      %vm108 = vcmp.lt.f32.partialorder %v106, 1.0
      %vm109 = vcmp.lt.f32.partialorder %v107, 1.0
      %v110 = vmul.f32 %v104, 0.5
      %v111 = vmul.f32 %v105, 0.5
      %v112 = vmul.f32 %v110, %v104
      %v113 = vmul.f32 %v111, %v105
      %v114 = vsub.f32 %v106, 0.5
      %v115 = vsub.f32 %v107, 0.5
      %v116 = vsel %vm108, %v112, %v114
      %v117 = vsel %vm109, %v113, %v115
      %v118 = vld [vmem:[#allocation8] sm:$0xff]
      %v119 = vadd.f32 %v116, %v117
      %v120 = vadd.f32 %v118, %v119
      %121 = vst [vmem:[#allocation8] sm:$0xff] %v120
    $region33: #{tpu_custom_call.1} parent=1 // pred_fallthru
      _
    // Predicated region
    $region34: #{tpu_custom_call.1} parent=1 // pred_check
      _
    $region35: #{tpu_custom_call.1} parent=1 // pred_check_branch
      %123 = sbr.rel (0) target = $region37
    $region36: #{tpu_custom_call.1} parent=1 // pred_region
      %s125 = ssub.s32 128, 128
      %126 = vsyncadd [#allocation4], %s125
      %s128 = sshll.u32 [#allocation8], 4
      %s129 = int_to_ptr.vmem [resolvable:$true] %s128
      %131 = dma.vmem_to_hbm [thread:$0]  %s129, 128, %s3, [#allocation4]
    $region37: #{tpu_custom_call.1} parent=1 // pred_fallthru
      _
    // Predicated region
    $region38: #{tpu_custom_call.1} parent=1 // pred_check
      _
    $region39: #{tpu_custom_call.1} parent=1 // pred_check_branch
      %133 = sbr.rel (0) target = $region41
    $region40: #{tpu_custom_call.1} parent=1 // pred_region
      %134 = dma.done [#allocation4], 128
    $region41: #{tpu_custom_call.1} parent=1 // pred_fallthru
      _
    %135 = vsyncpa [#allocation3], 1
    %136 = vsyncpa [#allocation6], 1
    %137 = vsyncpa [#allocation4], 1

</llo_original>
